<compile_context>
chip_gen: v5e
topology: v5e:2x2
jax: 0.10.0
libtpu: 0.0.40
codegen_flags: <defaults>
</compile_context>

<pallas_src>
import jax
import jax.numpy as jnp
from jax.experimental import pallas as pl
from jax.experimental.pallas import tpu as pltpu


def _round_up(x, m):
    return ((x + m - 1) // m) * m


# ----------------------------------------------------------------------------
# Fused kernel
# ----------------------------------------------------------------------------
def _make_updatemu_kernel(n_layers):
    """Build the fused MLP kernel for a static hidden-layer count."""

    def kernel(*refs):
        x_ref, w0_ref, b0_ref = refs[0], refs[1], refs[2]
        idx = 3
        hidden = []
        for _ in range(n_layers):
            hidden.append((refs[idx], refs[idx + 1]))   # (H,H) bf16, (1,H) f32
            idx += 2
        wout_ref, bout_ref, o_ref = refs[idx], refs[idx + 1], refs[idx + 2]

        # First Linear: input normalization is folded into w0/b0, so the raw
        # (already concatenated) inputs feed the MXU directly.  bf16 operands,
        # f32 accumulation.
        x = x_ref[...].astype(jnp.bfloat16)
        h = jnp.dot(x, w0_ref[...], preferred_element_type=jnp.float32) + b0_ref[...]
        h = jnp.maximum(h, 0.0)

        for w_ref, b_ref in hidden:
            h = jnp.dot(h.astype(jnp.bfloat16), w_ref[...],
                        preferred_element_type=jnp.float32) + b_ref[...]
            h = jnp.maximum(h, 0.0)

        # Output Linear (torch: no bias).  Output normalization (if enabled)
        # is folded into wout/bout; columns are zero-padded to a lane-dense
        # multiple of 128 so the store is an unmasked vst.
        y = jnp.dot(h.astype(jnp.bfloat16), wout_ref[...],
                    preferred_element_type=jnp.float32) + bout_ref[...]
        o_ref[...] = y.astype(o_ref.dtype)

    return kernel


def updatemu_forward(sigma, innovation, params, *, norm_out=True, tile_rows=1024):
    """Pallas implementation of UpdateMu.forward.

    sigma:      [B, Fs]  with Fs = sigma_size*(sigma_size+1)//2
    innovation: [B, Fi]  with Fi = innovation_size
    returns:    [B, state_size]
    """
    B = sigma.shape[0]
    # torch.cat: because normalization is folded into w0/b0 this is a pure
    # layout op (B x 16 floats); doing it once here lets the first layer be a
    # single MXU pass instead of two split dots inside the kernel.
    x = jnp.concatenate([sigma, innovation], axis=1)
    Fin = x.shape[1]
    H = params["w0"].shape[1]
    Opad = params["w_out_norm"].shape[1]
    O = params["state_size"]
    n_layers = len(params["hidden"])

    # Row tiling: large tiles for step/DMA amortization (v5e/v6e), capped so
    # the row grid has >= 4 blocks whenever B permits (keeps both v7x
    # TensorCores busy and preserves pipelining).
    rows8 = _round_up(B, 8)
    tm = min(_round_up(max(tile_rows, 8), 8), rows8)
    min_blocks = 4
    if rows8 >= min_blocks * 8:
        tm = min(tm, _round_up(pl.cdiv(rows8, min_blocks), 8))
    grid = (pl.cdiv(B, tm),)

    def const_spec(shape):
        # Whole-array block, same block index every step -> fetched once.
        return pl.BlockSpec(shape, lambda i: (0, 0))

    wout = params["w_out_norm"] if norm_out else params["w_out_raw"]
    bout = params["b_out_norm"] if norm_out else params["b_out_raw"]

    in_specs = [pl.BlockSpec((tm, Fin), lambda i: (i, 0)),
                const_spec(params["w0"].shape), const_spec((1, H))]
    args = [x, params["w0"], params["b0"]]
    for w, b in params["hidden"]:
        in_specs += [const_spec(w.shape), const_spec((1, H))]
        args += [w, b]
    in_specs += [const_spec(wout.shape), const_spec((1, Opad))]
    args += [wout, bout]

    # NOTE: at H=128 total resident weights are ~100 KB, far under every
    # generation's scoped VMEM; revisit vmem_limit_bytes only if H/n_layers grow.
    y = pl.pallas_call(
        _make_updatemu_kernel(n_layers),
        out_shape=jax.ShapeDtypeStruct((B, Opad), sigma.dtype),
        grid_spec=pltpu.PrefetchScalarGridSpec(
            num_scalar_prefetch=0,
            grid=grid,
            in_specs=in_specs,
            out_specs=pl.BlockSpec((tm, Opad), lambda i: (i, 0)),
        ),
        compiler_params=pltpu.CompilerParams(
            dimension_semantics=("parallel",)),
    )(*args)

    # Drop the lane padding (Opad -> state_size).
    return y[:, :O]


# ----------------------------------------------------------------------------
# Parameter setup (plain JAX glue; mirrors torch __init__, not the hot path)
# ----------------------------------------------------------------------------
def init_normalize(data):
    """Normalize.__init__: NaN-row-masked per-feature mean and unbiased std."""
    F = data.shape[-1]
    d2 = data.reshape(-1, F)
    mask = ~jnp.any(jnp.isnan(d2), axis=1)
    cnt = jnp.sum(mask).astype(d2.dtype)
    d2z = jnp.where(mask[:, None], d2, 0.0)
    mean = jnp.sum(d2z, axis=0) / cnt
    diff = jnp.where(mask[:, None], d2 - mean[None, :], 0.0)
    var = jnp.sum(diff * diff, axis=0) / (cnt - 1.0)   # ddof=1, matches torch.std
    std = jnp.sqrt(var)
    return mean, std


def init_updatemu_params(key, sigma_size, innovation_size, state_size,
                         hidden_size, n_layers,
                         sigma_data, innov_data, output_data,
                         dtype=jnp.float32):
    sig_feat = sigma_size * (sigma_size + 1) // 2
    in_feat = sig_feat + innovation_size

    def linear(kw, kb, fan_in, fan_out, bias=True):
        bound = float(fan_in) ** -0.5
        w = jax.random.uniform(kw, (fan_in, fan_out), dtype, -bound, bound)
        b = (jax.random.uniform(kb, (1, fan_out), dtype, -bound, bound)
             if bias else None)
        return w, b

    keys = jax.random.split(key, 2 * (n_layers + 2))
    w0, b0 = linear(keys[0], keys[1], in_feat, hidden_size)
    hidden = [linear(keys[2 + 2 * l], keys[3 + 2 * l], hidden_size, hidden_size)
              for l in range(n_layers)]
    w_out, _ = linear(keys[-2], keys[-1], hidden_size, state_size, bias=False)

    s_mean, s_std = init_normalize(sigma_data)
    i_mean, i_std = init_normalize(innov_data)
    o_mean, o_std = init_normalize(output_data)

    # ---- One-time init-side folds (not per-call wrapper work) --------------
    # (x*scale + bias) @ W0 + b0  ==  x @ (scale[:,None]*W0) + (bias @ W0 + b0)
    in_scale = jnp.concatenate([1.0 / s_std, 1.0 / i_std])            # (Fin,)
    in_bias = jnp.concatenate([-s_mean / s_std, -i_mean / i_std])     # (Fin,)
    w0_fold = w0 * in_scale[:, None]
    b0_fold = b0 + (in_bias @ w0)[None, :]

    # (h @ W_out) * o_scale + o_bias == h @ (W_out * o_scale) + o_bias
    o_scale = 1.0 / o_std
    o_bias = -o_mean / o_std
    opad = _round_up(max(state_size, 1), 128)

    def pad_cols(w, b):
        w_p = jnp.zeros((hidden_size, opad), dtype).at[:, :state_size].set(w)
        b_p = jnp.zeros((1, opad), dtype).at[:, :state_size].set(b)
        return w_p, b_p

    w_out_norm, b_out_norm = pad_cols(w_out * o_scale[None, :], o_bias[None, :])
    w_out_raw, b_out_raw = pad_cols(w_out, jnp.zeros((1, state_size), dtype))

    bf16 = jnp.bfloat16
    return dict(
        state_size=state_size,
        # bf16 weights (MXU operands), f32 biases (added to f32 accumulator)
        w0=w0_fold.astype(bf16), b0=b0_fold.astype(jnp.float32),
        hidden=[(w.astype(bf16), b.astype(jnp.float32)) for w, b in hidden],
        w_out_norm=w_out_norm.astype(bf16), b_out_norm=b_out_norm.astype(jnp.float32),
        w_out_raw=w_out_raw.astype(bf16), b_out_raw=b_out_raw.astype(jnp.float32),
        # original f32 params + stats, kept only for the reference checks
        f32=dict(w0=w0, b0=b0, hidden=hidden, w_out=w_out,
                 s_mean=s_mean, s_std=s_std, i_mean=i_mean, i_std=i_std,
                 o_mean=o_mean, o_std=o_std),
    )


# ----------------------------------------------------------------------------
# References
# ----------------------------------------------------------------------------
def updatemu_reference_f32(sigma, innovation, params, norm_out=True):
    """Original torch math (divide, concat) in full f32 — semantics check."""
    p = params["f32"]
    s = (sigma - p["s_mean"]) / p["s_std"]
    v = (innovation - p["i_mean"]) / p["i_std"]
    x = jnp.concatenate([s, v], axis=1)
    h = jnp.maximum(x @ p["w0"] + p["b0"], 0.0)
    for w, b in p["hidden"]:
        h = jnp.maximum(h @ w + b, 0.0)
    y = h @ p["w_out"]
    if norm_out:
        y = (y - p["o_mean"]) / p["o_std"]
    return y


def updatemu_reference_bf16(sigma, innovation, params, norm_out=True):
    """Same folded bf16 math as the kernel, in plain JAX — tight check."""
    x = jnp.concatenate([sigma, innovation], axis=1).astype(jnp.bfloat16)
    h = jnp.dot(x, params["w0"], preferred_element_type=jnp.float32) + params["b0"]
    h = jnp.maximum(h, 0.0)
    for w, b in params["hidden"]:
        h = jnp.dot(h.astype(jnp.bfloat16), w, preferred_element_type=jnp.float32) + b
        h = jnp.maximum(h, 0.0)
    wout = params["w_out_norm"] if norm_out else params["w_out_raw"]
    bout = params["b_out_norm"] if norm_out else params["b_out_raw"]
    y = jnp.dot(h.astype(jnp.bfloat16), wout, preferred_element_type=jnp.float32) + bout
    return y[:, :params["state_size"]]


# ----------------------------------------------------------------------------
# Demo / check
# ----------------------------------------------------------------------------
if __name__ == "__main__":
    key = jax.random.PRNGKey(0)
    k_p, k_sd, k_id, k_od, k_s, k_i = jax.random.split(key, 6)

    sigma_size = 4                      # -> 10 sigma features
    innovation_size = 6
    state_size = 8
    hidden_size = 128                   # lane-dense hidden width
    n_layers = 2
    B = 52                              # forward batch; exercises ragged last block
    sig_feat = sigma_size * (sigma_size + 1) // 2

    # Fitting data for the three Normalize modules (NaN-contaminated rows).
    sigma_data = jax.random.normal(k_sd, (40, sig_feat), jnp.float32) * 3.0 + 1.5
    sigma_data = sigma_data.at[3, 2].set(jnp.nan)
    innov_data = jax.random.normal(k_id, (40, innovation_size), jnp.float32) * 0.7 - 0.2
    innov_data = innov_data.at[5, 0].set(jnp.nan)
    output_data = jax.random.normal(k_od, (40, state_size), jnp.float32) * 2.0 + 0.5
    output_data = output_data.at[7, 4].set(jnp.nan)

    params = init_updatemu_params(
        k_p, sigma_size, innovation_size, state_size, hidden_size, n_layers,
        sigma_data, innov_data, output_data)

    sigma = jax.random.normal(k_s, (B, sig_feat), jnp.float32) * 2.0 + 1.0
    innovation = jax.random.normal(k_i, (B, innovation_size), jnp.float32)

    for norm_out in (True, False):
        y = updatemu_forward(sigma, innovation, params, norm_out=norm_out)
        y = jax.block_until_ready(y)

        assert y.shape == (B, state_size) and y.dtype == sigma.dtype
        assert bool(jnp.all(jnp.isfinite(y)))

        # Tight check: identical folded-bf16 math in plain JAX (catches kernel
        # bugs; only re-association noise should remain).
        y_bf = updatemu_reference_bf16(sigma, innovation, params, norm_out=norm_out)
        assert jnp.allclose(y, y_bf, rtol=2e-3, atol=2e-3), float(
            jnp.max(jnp.abs(y - y_bf)))

        # Looser semantics check vs the original f32 torch math; tolerance is
        # deliberately relaxed only because the kernel uses bf16 weights with
        # f32 accumulation.
        y_f32 = updatemu_reference_f32(sigma, innovation, params, norm_out=norm_out)
        assert jnp.allclose(y, y_f32, rtol=8e-2, atol=8e-2), float(
            jnp.max(jnp.abs(y - y_f32)))

    print("KERNEL_OK")
</pallas_src>

<mosaic_0001>
module attributes {stable_mosaic.version = 11 : i64} {
  func.func @kernel(%arg0: i32, %arg1: memref<16x16xf32, #tpu.memory_space<vmem>>, %arg2: memref<16x128xbf16, #tpu.memory_space<vmem>>, %arg3: memref<1x128xf32, #tpu.memory_space<vmem>>, %arg4: memref<128x128xbf16, #tpu.memory_space<vmem>>, %arg5: memref<1x128xf32, #tpu.memory_space<vmem>>, %arg6: memref<128x128xbf16, #tpu.memory_space<vmem>>, %arg7: memref<1x128xf32, #tpu.memory_space<vmem>>, %arg8: memref<128x128xbf16, #tpu.memory_space<vmem>>, %arg9: memref<1x128xf32, #tpu.memory_space<vmem>>, %arg10: memref<16x128xf32, #tpu.memory_space<vmem>>) attributes {dimension_semantics = [#tpu.dimension_semantics<parallel>], iteration_bounds = array<i64: 4>, scalar_prefetch = 0 : i64, scratch_operands = 0 : i64, tpu.core_type = #tpu.core_type<tc>, window_params = [{transform_indices = @transform_0, window_bounds = array<i64: 16, 16>}, {pipeline_mode = #tpu.pipeline_mode<synchronous>, transform_indices = @transform_1, window_bounds = array<i64: 16, 128>}, {pipeline_mode = #tpu.pipeline_mode<synchronous>, transform_indices = @transform_2, window_bounds = array<i64: 1, 128>}, {pipeline_mode = #tpu.pipeline_mode<synchronous>, transform_indices = @transform_3, window_bounds = array<i64: 128, 128>}, {pipeline_mode = #tpu.pipeline_mode<synchronous>, transform_indices = @transform_4, window_bounds = array<i64: 1, 128>}, {pipeline_mode = #tpu.pipeline_mode<synchronous>, transform_indices = @transform_5, window_bounds = array<i64: 128, 128>}, {pipeline_mode = #tpu.pipeline_mode<synchronous>, transform_indices = @transform_6, window_bounds = array<i64: 1, 128>}, {pipeline_mode = #tpu.pipeline_mode<synchronous>, transform_indices = @transform_7, window_bounds = array<i64: 128, 128>}, {pipeline_mode = #tpu.pipeline_mode<synchronous>, transform_indices = @transform_8, window_bounds = array<i64: 1, 128>}, {transform_indices = @transform_9, window_bounds = array<i64: 16, 128>}]} {
    %c0 = arith.constant 0 : index
    %c0_0 = arith.constant 0 : index
    %0 = vector.load %arg1[%c0, %c0_0] : memref<16x16xf32, #tpu.memory_space<vmem>>, vector<16x16xf32>
    %1 = arith.truncf %0 : vector<16x16xf32> to vector<16x16xbf16>
    %c0_1 = arith.constant 0 : index
    %c0_2 = arith.constant 0 : index
    %2 = vector.load %arg2[%c0_1, %c0_2] : memref<16x128xbf16, #tpu.memory_space<vmem>>, vector<16x128xbf16>
    %cst = arith.constant dense<0.000000e+00> : vector<16x128xf32>
    %3 = tpu.matmul %1, %2, %cst {dimension_numbers = #tpu.dot_dimension_numbers<[1], [0], [0], [1], [0, 0, 1, 1], [], []>} : vector<16x16xbf16>, vector<16x128xbf16>, vector<16x128xf32> -> vector<16x128xf32>
    %c0_3 = arith.constant 0 : index
    %c0_4 = arith.constant 0 : index
    %4 = vector.load %arg3[%c0_3, %c0_4] : memref<1x128xf32, #tpu.memory_space<vmem>>, vector<1x128xf32>
    %5 = vector.broadcast %4 : vector<1x128xf32> to vector<16x128xf32>
    %6 = arith.addf %3, %5 : vector<16x128xf32>
    %cst_5 = arith.constant 0.000000e+00 : f32
    %7 = vector.broadcast %cst_5 : f32 to vector<16x128xf32>
    %8 = arith.maximumf %6, %7 : vector<16x128xf32>
    %9 = arith.truncf %8 : vector<16x128xf32> to vector<16x128xbf16>
    %c0_6 = arith.constant 0 : index
    %c0_7 = arith.constant 0 : index
    %10 = vector.load %arg4[%c0_6, %c0_7] : memref<128x128xbf16, #tpu.memory_space<vmem>>, vector<128x128xbf16>
    %cst_8 = arith.constant dense<0.000000e+00> : vector<16x128xf32>
    %11 = tpu.matmul %9, %10, %cst_8 {dimension_numbers = #tpu.dot_dimension_numbers<[1], [0], [0], [1], [0, 0, 1, 1], [], []>} : vector<16x128xbf16>, vector<128x128xbf16>, vector<16x128xf32> -> vector<16x128xf32>
    %c0_9 = arith.constant 0 : index
    %c0_10 = arith.constant 0 : index
    %12 = vector.load %arg5[%c0_9, %c0_10] : memref<1x128xf32, #tpu.memory_space<vmem>>, vector<1x128xf32>
    %13 = vector.broadcast %12 : vector<1x128xf32> to vector<16x128xf32>
    %14 = arith.addf %11, %13 : vector<16x128xf32>
    %cst_11 = arith.constant 0.000000e+00 : f32
    %15 = vector.broadcast %cst_11 : f32 to vector<16x128xf32>
    %16 = arith.maximumf %14, %15 : vector<16x128xf32>
    %17 = arith.truncf %16 : vector<16x128xf32> to vector<16x128xbf16>
    %c0_12 = arith.constant 0 : index
    %c0_13 = arith.constant 0 : index
    %18 = vector.load %arg6[%c0_12, %c0_13] : memref<128x128xbf16, #tpu.memory_space<vmem>>, vector<128x128xbf16>
    %cst_14 = arith.constant dense<0.000000e+00> : vector<16x128xf32>
    %19 = tpu.matmul %17, %18, %cst_14 {dimension_numbers = #tpu.dot_dimension_numbers<[1], [0], [0], [1], [0, 0, 1, 1], [], []>} : vector<16x128xbf16>, vector<128x128xbf16>, vector<16x128xf32> -> vector<16x128xf32>
    %c0_15 = arith.constant 0 : index
    %c0_16 = arith.constant 0 : index
    %20 = vector.load %arg7[%c0_15, %c0_16] : memref<1x128xf32, #tpu.memory_space<vmem>>, vector<1x128xf32>
    %21 = vector.broadcast %20 : vector<1x128xf32> to vector<16x128xf32>
    %22 = arith.addf %19, %21 : vector<16x128xf32>
    %cst_17 = arith.constant 0.000000e+00 : f32
    %23 = vector.broadcast %cst_17 : f32 to vector<16x128xf32>
    %24 = arith.maximumf %22, %23 : vector<16x128xf32>
    %25 = arith.truncf %24 : vector<16x128xf32> to vector<16x128xbf16>
    %c0_18 = arith.constant 0 : index
    %c0_19 = arith.constant 0 : index
    %26 = vector.load %arg8[%c0_18, %c0_19] : memref<128x128xbf16, #tpu.memory_space<vmem>>, vector<128x128xbf16>
    %cst_20 = arith.constant dense<0.000000e+00> : vector<16x128xf32>
    %27 = tpu.matmul %25, %26, %cst_20 {dimension_numbers = #tpu.dot_dimension_numbers<[1], [0], [0], [1], [0, 0, 1, 1], [], []>} : vector<16x128xbf16>, vector<128x128xbf16>, vector<16x128xf32> -> vector<16x128xf32>
    %c0_21 = arith.constant 0 : index
    %c0_22 = arith.constant 0 : index
    %28 = vector.load %arg9[%c0_21, %c0_22] : memref<1x128xf32, #tpu.memory_space<vmem>>, vector<1x128xf32>
    %29 = vector.broadcast %28 : vector<1x128xf32> to vector<16x128xf32>
    %30 = arith.addf %27, %29 : vector<16x128xf32>
    %c0_23 = arith.constant 0 : index
    %c0_24 = arith.constant 0 : index
    %31 = vector.load %arg10[%c0_23, %c0_24] : memref<16x128xf32, #tpu.memory_space<vmem>>, vector<16x128xf32>
    tpu.vector_store %arg10[%c0_23, %c0_24], %30 {strides = array<i32>} : memref<16x128xf32, #tpu.memory_space<vmem>>, vector<16x128xf32>,
    return
  }
  func.func @transform_0(%arg0: i32) -> (i32, i32) {
    %c0_i32 = arith.constant 0 : i32
    %c0_i32_0 = arith.constant 0 : i32
    return %arg0, %c0_i32 : i32, i32
  }
  func.func @transform_1(%arg0: i32) -> (i32, i32) {
    %c0_i32 = arith.constant 0 : i32
    %c0_i32_0 = arith.constant 0 : i32
    %c0_i32_1 = arith.constant 0 : i32
    return %c0_i32, %c0_i32_0 : i32, i32
  }
  func.func @transform_2(%arg0: i32) -> (i32, i32) {
    %c0_i32 = arith.constant 0 : i32
    %c0_i32_0 = arith.constant 0 : i32
    %c0_i32_1 = arith.constant 0 : i32
    return %c0_i32, %c0_i32_0 : i32, i32
  }
  func.func @transform_3(%arg0: i32) -> (i32, i32) {
    %c0_i32 = arith.constant 0 : i32
    %c0_i32_0 = arith.constant 0 : i32
    %c0_i32_1 = arith.constant 0 : i32
    return %c0_i32, %c0_i32_0 : i32, i32
  }
  func.func @transform_4(%arg0: i32) -> (i32, i32) {
    %c0_i32 = arith.constant 0 : i32
    %c0_i32_0 = arith.constant 0 : i32
    %c0_i32_1 = arith.constant 0 : i32
    return %c0_i32, %c0_i32_0 : i32, i32
  }
  func.func @transform_5(%arg0: i32) -> (i32, i32) {
    %c0_i32 = arith.constant 0 : i32
    %c0_i32_0 = arith.constant 0 : i32
    %c0_i32_1 = arith.constant 0 : i32
    return %c0_i32, %c0_i32_0 : i32, i32
  }
  func.func @transform_6(%arg0: i32) -> (i32, i32) {
    %c0_i32 = arith.constant 0 : i32
    %c0_i32_0 = arith.constant 0 : i32
    %c0_i32_1 = arith.constant 0 : i32
    return %c0_i32, %c0_i32_0 : i32, i32
  }
  func.func @transform_7(%arg0: i32) -> (i32, i32) {
    %c0_i32 = arith.constant 0 : i32
    %c0_i32_0 = arith.constant 0 : i32
    %c0_i32_1 = arith.constant 0 : i32
    return %c0_i32, %c0_i32_0 : i32, i32
  }
  func.func @transform_8(%arg0: i32) -> (i32, i32) {
    %c0_i32 = arith.constant 0 : i32
    %c0_i32_0 = arith.constant 0 : i32
    %c0_i32_1 = arith.constant 0 : i32
    return %c0_i32, %c0_i32_0 : i32, i32
  }
  func.func @transform_9(%arg0: i32) -> (i32, i32) {
    %c0_i32 = arith.constant 0 : i32
    %c0_i32_0 = arith.constant 0 : i32
    return %arg0, %c0_i32 : i32, i32
  }
}

</mosaic_0001>

<llo_original>
// kernel: tpu_custom_call.1
$region0: #{tpu_custom_call.1}
  #allocation0 [shape = 'u32[]', space=smem, size = 0x4, offset = 0x4, fixed_abs, tag = 'smem constant byte address 0x4 - core index']
  #allocation1 [shape = 'u32[72,128]{1,0:T(1,128)}', space=vmem, size = 0x9000, scoped, tag = 'internal scratch']
  %s0 = inlined_call_operand.vmem [shape: f32[52,16], index: 0, kind: input, shape index: {}]
  %s1 = inlined_call_operand.vmem [shape: bf16[16,128], index: 1, kind: input, shape index: {}]
  %s2 = inlined_call_operand.vmem [shape: f32[1,128], index: 2, kind: input, shape index: {}]
  %s3 = inlined_call_operand.vmem [shape: bf16[128,128], index: 3, kind: input, shape index: {}]
  %s4 = inlined_call_operand.vmem [shape: f32[1,128], index: 4, kind: input, shape index: {}]
  %s5 = inlined_call_operand.hbm [shape: bf16[128,128], index: 5, kind: input, shape index: {}]
  %s6 = inlined_call_operand.vmem [shape: f32[1,128], index: 6, kind: input, shape index: {}]
  %s7 = inlined_call_operand.hbm [shape: bf16[128,128], index: 7, kind: input, shape index: {}]
  %s8 = inlined_call_operand.vmem [shape: f32[1,128], index: 8, kind: input, shape index: {}]
  %s9 = inlined_call_operand.hbm [shape: f32[52,128], index: 9, kind: output, shape index: {}]
  %s10 = sld [smem:[#allocation0]]
  $region77: #{tpu_custom_call.1} parent=0
    _
  %s12 = ssub.s32 1, %s10
  %s13 = scalar_select 0, %s12, %s10
  $region1: #{tpu_custom_call.1} parent=0
    #allocation2 [shape = 'u8[32768]{0}', space=vmem, size = 0x8000, scoped, tag = 'input window, operand 5, single buffered']
    #allocation3 [shape = 's32[2]{0}', space=sflag, size = 0x8, scoped, tag = 'scoped memory for tpu_custom_call.1']
    #allocation4 [shape = 's32[2]{0}', space=sflag, size = 0x8, scoped, tag = 'scoped memory for tpu_custom_call.1']
    #allocation5 [shape = 'u8[32768]{0}', space=vmem, size = 0x8000, scoped, tag = 'input window, operand 7, single buffered']
    #allocation6 [shape = 's32[1]{0}', space=sflag, size = 0x4, scoped, tag = 'scoped memory for tpu_custom_call.1']
    #allocation7 [shape = 'u8[16384]{0}', space=vmem, size = 0x4000, scoped, tag = 'output window, operand 0']
    %14 = vsyncpa [#allocation3], 0
    %15 = vsyncpa [#allocation6], 0
    %16 = vsyncpa [#allocation4], 0
    %s17 = scalar_lea.sflag [#allocation4], 1
    %18 = vsyncpa %s17, 0
    loop: start=0, step=1, limit=6
    $region2: #{tpu_custom_call.1} parent=1 // loop_pre_header
      _
    $region3: #{tpu_custom_call.1} parent=1 // loop_header
      %s20 = sphi 0, %s24
      %p21 = scmp.ge.s32.totalorder %s20, 6
      %s30 = sphi 0, %s32
      %s33 = sphi 0, %s30
      %s34 = sphi 0, %s33
      %s50 = sphi 0, %s34
      %s54 = sphi 0, %s54
      %s56 = sphi 0, %s54
      %s57 = sphi 0, %s56
      %s71 = sphi 0, %s57
      %s75 = sphi 0, %s75
      %s77 = sphi 0, %s75
      %s78 = sphi 0, %s77
      %s92 = sphi 0, %s78
      %s96 = sphi 0, %s96
      %s98 = sphi 0, %s96
      %s99 = sphi 0, %s98
      %s113 = sphi 0, %s99
      %s117 = sphi 0, %s117
      %s119 = sphi 0, %s117
      %s120 = sphi 0, %s119
      %s134 = sphi 0, %s120
      %s138 = sphi 0, %s138
      %s140 = sphi 0, %s138
      %s141 = sphi 0, %s140
      %s155 = sphi 0, %s141
      %s159 = sphi 0, %s159
      %s161 = sphi 0, %s159
      %s162 = sphi 0, %s161
      %s176 = sphi 0, %s162
      %s180 = sphi 0, %s180
      %s182 = sphi 0, %s180
      %s183 = sphi 0, %s182
      %s197 = sphi 0, %s183
      %s201 = sphi 0, %s201
      %s203 = sphi 0, %s201
      %s204 = sphi 0, %s203
      %s218 = sphi 0, %s204
      %s224 = sphi 0, %s226
      %s227 = sphi 0, %s224
      %s228 = sphi 0, %s227
      %s244 = sphi 0, %s228
    $region4: #{tpu_custom_call.1} parent=1 // loop_header_branch
      %23 = sbr.rel (%p21) target = $region8
    $region5: #{tpu_custom_call.1} parent=1 // loop_body
      %s25 = ssub.s32 %s20, 1
      %s26 = ssub.s32 %s20, 2
      %s27 = sadd.s32 %s20, 1
      %s28 = ssub.s32 %s20, %s27
      %p29 = scmp.eq.s32.totalorder %s28, 0
      %s31 = sadd.s32 %s30, 1
      %s32 = scalar_select %p29, %s30, %s31
      %p35 = pneg %p29
      %p36 = scmp.eq.s32.totalorder %s20, 3
      %p37 = por %p35, %p36
      %p38 = scmp.ne.s32.totalorder %s30, %s33
      %p39 = scmp.eq.s32.totalorder %s20, 0
      %p40 = por %p38, %p39
      %p41 = scmp.ne.s32.totalorder %s30, %s33
      %p42 = scmp.eq.s32.totalorder %s25, 3
      %p43 = por %p41, %p42
      %p44 = scmp.ne.s32.totalorder %s33, %s34
      %p45 = scmp.eq.s32.totalorder %s25, 0
      %p46 = por %p44, %p45
      %p47 = scmp.ne.s32.totalorder %s33, %s34
      %p48 = scmp.eq.s32.totalorder %s26, 3
      %p49 = por %p47, %p48
      %p51 = scmp.ne.s32.totalorder %s34, %s50
      %p52 = scmp.eq.s32.totalorder %s26, 0
      %p53 = por %p51, %p52
      %s55 = sadd.s32 %s54, 1
      %p58 = scmp.eq.s32.totalorder %s20, 3
      %p59 = scmp.ne.s32.totalorder %s54, %s56
      %p60 = scmp.eq.s32.totalorder %s20, 0
      %p61 = por %p59, %p60
      %p62 = scmp.ne.s32.totalorder %s54, %s56
      %p63 = scmp.eq.s32.totalorder %s25, 3
      %p64 = por %p62, %p63
      %p65 = scmp.ne.s32.totalorder %s56, %s57
      %p66 = scmp.eq.s32.totalorder %s25, 0
      %p67 = por %p65, %p66
      %p68 = scmp.ne.s32.totalorder %s56, %s57
      %p69 = scmp.eq.s32.totalorder %s26, 3
      %p70 = por %p68, %p69
      %p72 = scmp.ne.s32.totalorder %s57, %s71
      %p73 = scmp.eq.s32.totalorder %s26, 0
      %p74 = por %p72, %p73
      %s76 = sadd.s32 %s75, 1
      %p79 = scmp.eq.s32.totalorder %s20, 3
      %p80 = scmp.ne.s32.totalorder %s75, %s77
      %p81 = scmp.eq.s32.totalorder %s20, 0
      %p82 = por %p80, %p81
      %p83 = scmp.ne.s32.totalorder %s75, %s77
      %p84 = scmp.eq.s32.totalorder %s25, 3
      %p85 = por %p83, %p84
      %p86 = scmp.ne.s32.totalorder %s77, %s78
      %p87 = scmp.eq.s32.totalorder %s25, 0
      %p88 = por %p86, %p87
      %p89 = scmp.ne.s32.totalorder %s77, %s78
      %p90 = scmp.eq.s32.totalorder %s26, 3
      %p91 = por %p89, %p90
      %p93 = scmp.ne.s32.totalorder %s78, %s92
      %p94 = scmp.eq.s32.totalorder %s26, 0
      %p95 = por %p93, %p94
      %s97 = sadd.s32 %s96, 1
      %p100 = scmp.eq.s32.totalorder %s20, 3
      %p101 = scmp.ne.s32.totalorder %s96, %s98
      %p102 = scmp.eq.s32.totalorder %s20, 0
      %p103 = por %p101, %p102
      %p104 = scmp.ne.s32.totalorder %s96, %s98
      %p105 = scmp.eq.s32.totalorder %s25, 3
      %p106 = por %p104, %p105
      %p107 = scmp.ne.s32.totalorder %s98, %s99
      %p108 = scmp.eq.s32.totalorder %s25, 0
      %p109 = por %p107, %p108
      %p110 = scmp.ne.s32.totalorder %s98, %s99
      %p111 = scmp.eq.s32.totalorder %s26, 3
      %p112 = por %p110, %p111
      %p114 = scmp.ne.s32.totalorder %s99, %s113
      %p115 = scmp.eq.s32.totalorder %s26, 0
      %p116 = por %p114, %p115
      %s118 = sadd.s32 %s117, 1
      %p121 = scmp.eq.s32.totalorder %s20, 3
      %p122 = scmp.ne.s32.totalorder %s117, %s119
      %p123 = scmp.eq.s32.totalorder %s20, 0
      %p124 = por %p122, %p123
      %p125 = scmp.ne.s32.totalorder %s117, %s119
      %p126 = scmp.eq.s32.totalorder %s25, 3
      %p127 = por %p125, %p126
      %p128 = scmp.ne.s32.totalorder %s119, %s120
      %p129 = scmp.eq.s32.totalorder %s25, 0
      %p130 = por %p128, %p129
      %p131 = scmp.ne.s32.totalorder %s119, %s120
      %p132 = scmp.eq.s32.totalorder %s26, 3
      %p133 = por %p131, %p132
      %p135 = scmp.ne.s32.totalorder %s120, %s134
      %p136 = scmp.eq.s32.totalorder %s26, 0
      %p137 = por %p135, %p136
      %s139 = sadd.s32 %s138, 1
      %p142 = scmp.eq.s32.totalorder %s20, 3
      %p143 = scmp.ne.s32.totalorder %s138, %s140
      %p144 = scmp.eq.s32.totalorder %s20, 0
      %p145 = por %p143, %p144
      %p146 = scmp.ne.s32.totalorder %s138, %s140
      %p147 = scmp.eq.s32.totalorder %s25, 3
      %p148 = por %p146, %p147
      %p149 = scmp.ne.s32.totalorder %s140, %s141
      %p150 = scmp.eq.s32.totalorder %s25, 0
      %p151 = por %p149, %p150
      %p152 = scmp.ne.s32.totalorder %s140, %s141
      %p153 = scmp.eq.s32.totalorder %s26, 3
      %p154 = por %p152, %p153
      %p156 = scmp.ne.s32.totalorder %s141, %s155
      %p157 = scmp.eq.s32.totalorder %s26, 0
      %p158 = por %p156, %p157
      %s160 = sadd.s32 %s159, 1
      %p163 = scmp.eq.s32.totalorder %s20, 3
      %p164 = scmp.ne.s32.totalorder %s159, %s161
      %p165 = scmp.eq.s32.totalorder %s20, 0
      %p166 = por %p164, %p165
      %p167 = scmp.ne.s32.totalorder %s159, %s161
      %p168 = scmp.eq.s32.totalorder %s25, 3
      %p169 = por %p167, %p168
      %p170 = scmp.ne.s32.totalorder %s161, %s162
      %p171 = scmp.eq.s32.totalorder %s25, 0
      %p172 = por %p170, %p171
      %p173 = scmp.ne.s32.totalorder %s161, %s162
      %p174 = scmp.eq.s32.totalorder %s26, 3
      %p175 = por %p173, %p174
      %p177 = scmp.ne.s32.totalorder %s162, %s176
      %p178 = scmp.eq.s32.totalorder %s26, 0
      %p179 = por %p177, %p178
      %s181 = sadd.s32 %s180, 1
      %p184 = scmp.eq.s32.totalorder %s20, 3
      %p185 = scmp.ne.s32.totalorder %s180, %s182
      %p186 = scmp.eq.s32.totalorder %s20, 0
      %p187 = por %p185, %p186
      %p188 = scmp.ne.s32.totalorder %s180, %s182
      %p189 = scmp.eq.s32.totalorder %s25, 3
      %p190 = por %p188, %p189
      %p191 = scmp.ne.s32.totalorder %s182, %s183
      %p192 = scmp.eq.s32.totalorder %s25, 0
      %p193 = por %p191, %p192
      %p194 = scmp.ne.s32.totalorder %s182, %s183
      %p195 = scmp.eq.s32.totalorder %s26, 3
      %p196 = por %p194, %p195
      %p198 = scmp.ne.s32.totalorder %s183, %s197
      %p199 = scmp.eq.s32.totalorder %s26, 0
      %p200 = por %p198, %p199
      %s202 = sadd.s32 %s201, 1
      %p205 = scmp.eq.s32.totalorder %s20, 3
      %p206 = scmp.ne.s32.totalorder %s201, %s203
      %p207 = scmp.eq.s32.totalorder %s20, 0
      %p208 = por %p206, %p207
      %p209 = scmp.ne.s32.totalorder %s201, %s203
      %p210 = scmp.eq.s32.totalorder %s25, 3
      %p211 = por %p209, %p210
      %p212 = scmp.ne.s32.totalorder %s203, %s204
      %p213 = scmp.eq.s32.totalorder %s25, 0
      %p214 = por %p212, %p213
      %p215 = scmp.ne.s32.totalorder %s203, %s204
      %p216 = scmp.eq.s32.totalorder %s26, 3
      %p217 = por %p215, %p216
      %p219 = scmp.ne.s32.totalorder %s204, %s218
      %p220 = scmp.eq.s32.totalorder %s26, 0
      %p221 = por %p219, %p220
      %s222 = ssub.s32 %s20, %s27
      %p223 = scmp.eq.s32.totalorder %s222, 0
      %s225 = sadd.s32 %s224, 1
      %s226 = scalar_select %p223, %s224, %s225
      %p229 = pneg %p223
      %p230 = scmp.eq.s32.totalorder %s20, 3
      %p231 = por %p229, %p230
      %p232 = scmp.ne.s32.totalorder %s224, %s227
      %p233 = scmp.eq.s32.totalorder %s20, 0
      %p234 = por %p232, %p233
      %p235 = scmp.ne.s32.totalorder %s224, %s227
      %p236 = scmp.eq.s32.totalorder %s25, 3
      %p237 = por %p235, %p236
      %p238 = scmp.ne.s32.totalorder %s227, %s228
      %p239 = scmp.eq.s32.totalorder %s25, 0
      %p240 = por %p238, %p239
      %p241 = scmp.ne.s32.totalorder %s227, %s228
      %p242 = scmp.eq.s32.totalorder %s26, 3
      %p243 = por %p241, %p242
      %p245 = scmp.ne.s32.totalorder %s228, %s244
      %p246 = scmp.eq.s32.totalorder %s26, 0
      %p247 = por %p245, %p246
      %p248 = scmp.le.s32.totalorder 1, %s20
      %p249 = scmp.lt.s32.totalorder %s20, 5
      %p250 = pnand %p248, %p249
      %p251 = pneg %p250
      // Predicated region
      $region9: #{tpu_custom_call.1} parent=5 // pred_check
        _
      $region10: #{tpu_custom_call.1} parent=5 // pred_check_branch
        %253 = sbr.rel (%p250) target = $region12
      $region11: #{tpu_custom_call.1} parent=5 // pred_region
        %s254 = ssub.s32 %s20, 1
        // Predicated region
        $region13: #{tpu_custom_call.1} parent=11 // pred_check
          %p255 = pneg %p67
        $region14: #{tpu_custom_call.1} parent=11 // pred_check_branch
          %257 = sbr.rel (%p255) target = $region16
        $region15: #{tpu_custom_call.1} parent=11 // pred_region
          _
        $region16: #{tpu_custom_call.1} parent=11 // pred_fallthru
          _
        // Predicated region
        $region17: #{tpu_custom_call.1} parent=11 // pred_check
          %p258 = pneg %p88
        $region18: #{tpu_custom_call.1} parent=11 // pred_check_branch
          %260 = sbr.rel (%p258) target = $region20
        $region19: #{tpu_custom_call.1} parent=11 // pred_region
          _
        $region20: #{tpu_custom_call.1} parent=11 // pred_fallthru
          _
        // Predicated region
        $region21: #{tpu_custom_call.1} parent=11 // pred_check
          %p261 = pneg %p109
        $region22: #{tpu_custom_call.1} parent=11 // pred_check_branch
          %263 = sbr.rel (%p261) target = $region24
        $region23: #{tpu_custom_call.1} parent=11 // pred_region
          _
        $region24: #{tpu_custom_call.1} parent=11 // pred_fallthru
          _
        // Predicated region
        $region25: #{tpu_custom_call.1} parent=11 // pred_check
          %p264 = pneg %p130
        $region26: #{tpu_custom_call.1} parent=11 // pred_check_branch
          %266 = sbr.rel (%p264) target = $region28
        $region27: #{tpu_custom_call.1} parent=11 // pred_region
          _
        $region28: #{tpu_custom_call.1} parent=11 // pred_fallthru
          _
        // Predicated region
        $region29: #{tpu_custom_call.1} parent=11 // pred_check
          %p267 = pneg %p151
        $region30: #{tpu_custom_call.1} parent=11 // pred_check_branch
          %269 = sbr.rel (%p267) target = $region32
        $region31: #{tpu_custom_call.1} parent=11 // pred_region
          %271 = vsyncadd [#allocation3], 0
          %s272 = sshll.u32 %s5, 4
          %s273 = int_to_ptr.hbm [resolvable:$true] %s272
          %s274 = sshll.u32 [#allocation2], 4
          %s275 = int_to_ptr.vmem [resolvable:$true] %s274
          %280 = dma.hbm_to_vmem [thread:$0]  %s273, 1024, %s275, [#allocation3], 64, 64, 4
        $region32: #{tpu_custom_call.1} parent=11 // pred_fallthru
          _
        // Predicated region
        $region33: #{tpu_custom_call.1} parent=11 // pred_check
          %p281 = pneg %p172
        $region34: #{tpu_custom_call.1} parent=11 // pred_check_branch
          %283 = sbr.rel (%p281) target = $region36
        $region35: #{tpu_custom_call.1} parent=11 // pred_region
          _
        $region36: #{tpu_custom_call.1} parent=11 // pred_fallthru
          _
        // Predicated region
        $region37: #{tpu_custom_call.1} parent=11 // pred_check
          %p284 = pneg %p193
        $region38: #{tpu_custom_call.1} parent=11 // pred_check_branch
          %286 = sbr.rel (%p284) target = $region40
        $region39: #{tpu_custom_call.1} parent=11 // pred_region
          %288 = vsyncadd [#allocation6], 0
          %s289 = sshll.u32 %s7, 4
          %s290 = int_to_ptr.hbm [resolvable:$true] %s289
          %s291 = sshll.u32 [#allocation5], 4
          %s292 = int_to_ptr.vmem [resolvable:$true] %s291
          %297 = dma.hbm_to_vmem [thread:$0]  %s290, 1024, %s292, [#allocation6], 64, 64, 4
        $region40: #{tpu_custom_call.1} parent=11 // pred_fallthru
          _
        // Predicated region
        $region41: #{tpu_custom_call.1} parent=11 // pred_check
          %p298 = pneg %p214
        $region42: #{tpu_custom_call.1} parent=11 // pred_check_branch
          %300 = sbr.rel (%p298) target = $region44
        $region43: #{tpu_custom_call.1} parent=11 // pred_region
          _
        $region44: #{tpu_custom_call.1} parent=11 // pred_fallthru
          _
      $region12: #{tpu_custom_call.1} parent=5 // pred_fallthru
        _
      %p301 = scmp.lt.s32.totalorder %s20, 4
      // Predicated region
      $region45: #{tpu_custom_call.1} parent=5 // pred_check
        %p302 = pneg %p301
      $region46: #{tpu_custom_call.1} parent=5 // pred_check_branch
        %304 = sbr.rel (%p302) target = $region48
      $region47: #{tpu_custom_call.1} parent=5 // pred_region
        // Predicated region
        $region49: #{tpu_custom_call.1} parent=47 // pred_check
          %p305 = pneg %p40
        $region50: #{tpu_custom_call.1} parent=47 // pred_check_branch
          %307 = sbr.rel (%p305) target = $region52
        $region51: #{tpu_custom_call.1} parent=47 // pred_region
          %s308 = smul.u32 2, %s20
          %s309 = ssub.s32 7, %s308
          %p310 = scmp.lt.s32.totalorder %s309, 2
          %s311 = scalar_select %p310, %s309, 2
          %s312 = smul.u32 8, %s311
          %p313 = scmp.lt.s32.totalorder %s308, 6
          %s314 = scalar_select %p313, %s308, 6
          %s315 = smul.addr %s314, 8
          %s316 = scalar_lea.vmem %s0, %s315
          %s317 = smul.u32 2, %s20
          %s318 = ssub.s32 7, %s317
          %p319 = scmp.lt.s32.totalorder %s318, 2
          %s320 = scalar_select %p319, %s318, 2
          %s321 = smul.u32 8, %s320
        $region52: #{tpu_custom_call.1} parent=47 // pred_fallthru
          _
      $region48: #{tpu_custom_call.1} parent=5 // pred_fallthru
        _
      %p322 = scmp.le.s32.totalorder 1, %s20
      %p323 = scmp.lt.s32.totalorder %s20, 5
      %p324 = pnand %p322, %p323
      %p325 = pneg %p324
      // Predicated region
      $region53: #{tpu_custom_call.1} parent=5 // pred_check
        _
      $region54: #{tpu_custom_call.1} parent=5 // pred_check_branch
        %327 = sbr.rel (%p324) target = $region56
      $region55: #{tpu_custom_call.1} parent=5 // pred_region
        %s328 = ssub.s32 %s20, 1
        // Predicated region
        $region57: #{tpu_custom_call.1} parent=55 // pred_check
          %p329 = pneg %p151
        $region58: #{tpu_custom_call.1} parent=55 // pred_check_branch
          %331 = sbr.rel (%p329) target = $region60
        $region59: #{tpu_custom_call.1} parent=55 // pred_region
          %333 = dma.done [#allocation3], 1024
        $region60: #{tpu_custom_call.1} parent=55 // pred_fallthru
          _
        // Predicated region
        $region61: #{tpu_custom_call.1} parent=55 // pred_check
          %p334 = pneg %p193
        $region62: #{tpu_custom_call.1} parent=55 // pred_check_branch
          %336 = sbr.rel (%p334) target = $region64
        $region63: #{tpu_custom_call.1} parent=55 // pred_region
          %338 = dma.done [#allocation6], 1024
        $region64: #{tpu_custom_call.1} parent=55 // pred_fallthru
          _
        %s339 = smul.u32 2, %s25
        %s340 = ssub.s32 7, %s339
        %p341 = scmp.lt.s32.totalorder %s340, 2
        %s342 = scalar_select %p341, %s340, 2
        %s343 = smul.u32 8, %s342
        %p344 = scmp.lt.s32.totalorder %s339, 6
        %s345 = scalar_select %p344, %s339, 6
        %s346 = smul.addr %s345, 8
        %s347 = scalar_lea.vmem %s0, %s346
        %p348 = pneg %p46
        %p349 = pneg %p43
        %p350 = pneg %p67
        %p351 = pneg %p64
        %p352 = pneg %p88
        %p353 = pneg %p85
        %p354 = pneg %p109
        %p355 = pneg %p106
        %p356 = pneg %p130
        %p357 = pneg %p127
        %p358 = pneg %p151
        %p359 = pneg %p148
        %p360 = pneg %p172
        %p361 = pneg %p169
        %p362 = pneg %p193
        %p363 = pneg %p190
        %p364 = pneg %p214
        %p365 = pneg %p211
        %p366 = pneg %p240
        %p367 = pneg %p237
        %s368 = sand.u32 %s227, 1
        %s369 = scalar_lea.sflag [#allocation4], %s368
        %s370 = sand.u32 %s227, 1
        %s371 = smul.addr %s370, 16
        %s372 = scalar_lea.vmem [#allocation7], %s371
        %s373 = smul.u32 2, %s25
        %s374 = ssub.s32 7, %s373
        %p375 = scmp.lt.s32.totalorder %s374, 2
        %s376 = scalar_select %p375, %s374, 2
        %s377 = smul.u32 8, %s376
        %p378 = scmp.lt.s32.totalorder %s373, 6
        %s379 = scalar_select %p378, %s373, 6
        %s380 = smul.addr %s379, 8
        %s381 = scalar_lea.vmem %s0, %s380
        %s382 = smul.u32 2, %s25
        %s383 = ssub.s32 7, %s382
        %p384 = scmp.lt.s32.totalorder %s383, 2
        %s385 = scalar_select %p384, %s383, 2
        %s386 = smul.u32 8, %s385
        %s387 = smul.u32 2, %s25
        %s388 = ssub.s32 7, %s387
        %p389 = scmp.lt.s32.totalorder %s388, 2
        %s390 = scalar_select %p389, %s388, 2
        %s391 = smul.u32 8, %s390
        %v393 = vld [vmem:[%s381] sm:$0xff]
        %v394 = vld [vmem:[%s381 + $0x8] sm:$0xff]
        %v395 = vpack.c.bf16 %v394, %v393
        %v396 = vld [vmem:[%s1] sm:$0xf]
        %v397 = vld [vmem:[%s1 + $0x4] sm:$0xf]
        %v398 = vld [vmem:[%s2] sm:$0x1]
        %v400 = vperm.slane %v398, 0
        %v404 = vunpack.c.l.b16 %v396
        %v405 = vunpack.c.l.b16 %v397
        %v406 = vpack.c.b16 %v405, %v404
        %vm408 = vcmask 130048
        %v410 = vsel %vm408, %v395, 0
        %412 = vmatpush.bf16.msra.mxu0 0
        %413 = vmatpush.bf16.msra.mxu0 0
        %414 = vmatpush.bf16.msra.mxu0 0
        %415 = vmatpush.bf16.msra.mxu0 0
        %416 = vmatpush.bf16.msra.mxu0 0
        %417 = vmatpush.bf16.msra.mxu0 0
        %418 = vmatpush.bf16.msra.mxu0 0
        %419 = vmatpush.bf16.msra.mxu0 %v406
        %420 = vmatmul.bf16.gmra.mxu0 %v410
        %v421 = vpop.f32.mrf.mxu0
        %v422 = vadd.f32 %v400, %v421
        %v423 = vpop.f32.mrf.mxu0
        %v424 = vadd.f32 %v400, %v423
        %425 = vdwg.mxu0
        %v426 = vmax.f32 %v422, 0.0
        %v427 = vmax.f32 %v424, 0.0
        %v428 = vpack.c.bf16 %v427, %v426
        %v429 = vld [vmem:[%s3] sm:$0xf]
        %v430 = vld [vmem:[%s3 + $0x4] sm:$0xf]
        %v431 = vld [vmem:[%s3 + $0x8] sm:$0xf]
        %v432 = vld [vmem:[%s3 + $0xc] sm:$0xf]
        %v433 = vld [vmem:[%s3 + $0x10] sm:$0xf]
        %v434 = vld [vmem:[%s3 + $0x14] sm:$0xf]
        %v435 = vld [vmem:[%s3 + $0x18] sm:$0xf]
        %v436 = vld [vmem:[%s3 + $0x1c] sm:$0xf]
        %v437 = vld [vmem:[%s3 + $0x20] sm:$0xf]
        %v438 = vld [vmem:[%s3 + $0x24] sm:$0xf]
        %v439 = vld [vmem:[%s3 + $0x28] sm:$0xf]
        %v440 = vld [vmem:[%s3 + $0x2c] sm:$0xf]
        %v441 = vld [vmem:[%s3 + $0x30] sm:$0xf]
        %v442 = vld [vmem:[%s3 + $0x34] sm:$0xf]
        %v443 = vld [vmem:[%s3 + $0x38] sm:$0xf]
        %v444 = vld [vmem:[%s3 + $0x3c] sm:$0xf]
        %v445 = vld [vmem:[%s4] sm:$0x1]
        %v447 = vperm.slane %v445, 0
        %v465 = vunpack.c.l.b16 %v429
        %v466 = vunpack.c.l.b16 %v430
        %v467 = vunpack.c.l.b16 %v431
        %v468 = vunpack.c.l.b16 %v432
        %v469 = vunpack.c.l.b16 %v433
        %v470 = vunpack.c.l.b16 %v434
        %v471 = vunpack.c.l.b16 %v435
        %v472 = vunpack.c.l.b16 %v436
        %v473 = vunpack.c.l.b16 %v437
        %v474 = vunpack.c.l.b16 %v438
        %v475 = vunpack.c.l.b16 %v439
        %v476 = vunpack.c.l.b16 %v440
        %v477 = vunpack.c.l.b16 %v441
        %v478 = vunpack.c.l.b16 %v442
        %v479 = vunpack.c.l.b16 %v443
        %v480 = vunpack.c.l.b16 %v444
        %v481 = vpack.c.b16 %v466, %v465
        %v482 = vpack.c.b16 %v468, %v467
        %v483 = vpack.c.b16 %v470, %v469
        %v484 = vpack.c.b16 %v472, %v471
        %v485 = vpack.c.b16 %v474, %v473
        %v486 = vpack.c.b16 %v476, %v475
        %v487 = vpack.c.b16 %v478, %v477
        %v488 = vpack.c.b16 %v480, %v479
        %497 = vmatpush.bf16.msra.mxu0 %v488
        %498 = vmatpush.bf16.msra.mxu0 %v487
        %499 = vmatpush.bf16.msra.mxu0 %v486
        %500 = vmatpush.bf16.msra.mxu0 %v485
        %501 = vmatpush.bf16.msra.mxu0 %v484
        %502 = vmatpush.bf16.msra.mxu0 %v483
        %503 = vmatpush.bf16.msra.mxu0 %v482
        %504 = vmatpush.bf16.msra.mxu0 %v481
        %505 = vmatmul.bf16.gmra.mxu0 %v428
        %v506 = vpop.f32.mrf.mxu0
        %v507 = vadd.f32 %v447, %v506
        %v508 = vpop.f32.mrf.mxu0
        %v509 = vadd.f32 %v447, %v508
        %510 = vdwg.mxu0
        %v511 = vmax.f32 %v507, 0.0
        %v512 = vmax.f32 %v509, 0.0
        %v513 = vpack.c.bf16 %v512, %v511
        %v514 = vld [vmem:[#allocation2] sm:$0xf]
        %v515 = vld [vmem:[#allocation2 + $0x4] sm:$0xf]
        %v516 = vld [vmem:[#allocation2 + $0x8] sm:$0xf]
        %v517 = vld [vmem:[#allocation2 + $0xc] sm:$0xf]
        %v518 = vld [vmem:[#allocation2 + $0x10] sm:$0xf]
        %v519 = vld [vmem:[#allocation2 + $0x14] sm:$0xf]
        %v520 = vld [vmem:[#allocation2 + $0x18] sm:$0xf]
        %v521 = vld [vmem:[#allocation2 + $0x1c] sm:$0xf]
        %v522 = vld [vmem:[#allocation2 + $0x20] sm:$0xf]
        %v523 = vld [vmem:[#allocation2 + $0x24] sm:$0xf]
        %v524 = vld [vmem:[#allocation2 + $0x28] sm:$0xf]
        %v525 = vld [vmem:[#allocation2 + $0x2c] sm:$0xf]
        %v526 = vld [vmem:[#allocation2 + $0x30] sm:$0xf]
        %v527 = vld [vmem:[#allocation2 + $0x34] sm:$0xf]
        %v528 = vld [vmem:[#allocation2 + $0x38] sm:$0xf]
        %v529 = vld [vmem:[#allocation2 + $0x3c] sm:$0xf]
        %v530 = vld [vmem:[%s6] sm:$0x1]
        %v532 = vperm.slane %v530, 0
        %v550 = vunpack.c.l.b16 %v514
        %v551 = vunpack.c.l.b16 %v515
        %v552 = vunpack.c.l.b16 %v516
        %v553 = vunpack.c.l.b16 %v517
        %v554 = vunpack.c.l.b16 %v518
        %v555 = vunpack.c.l.b16 %v519
        %v556 = vunpack.c.l.b16 %v520
        %v557 = vunpack.c.l.b16 %v521
        %v558 = vunpack.c.l.b16 %v522
        %v559 = vunpack.c.l.b16 %v523
        %v560 = vunpack.c.l.b16 %v524
        %v561 = vunpack.c.l.b16 %v525
        %v562 = vunpack.c.l.b16 %v526
        %v563 = vunpack.c.l.b16 %v527
        %v564 = vunpack.c.l.b16 %v528
        %v565 = vunpack.c.l.b16 %v529
        %v566 = vpack.c.b16 %v551, %v550
        %v567 = vpack.c.b16 %v553, %v552
        %v568 = vpack.c.b16 %v555, %v554
        %v569 = vpack.c.b16 %v557, %v556
        %v570 = vpack.c.b16 %v559, %v558
        %v571 = vpack.c.b16 %v561, %v560
        %v572 = vpack.c.b16 %v563, %v562
        %v573 = vpack.c.b16 %v565, %v564
        %582 = vmatpush.bf16.msra.mxu0 %v573
        %583 = vmatpush.bf16.msra.mxu0 %v572
        %584 = vmatpush.bf16.msra.mxu0 %v571
        %585 = vmatpush.bf16.msra.mxu0 %v570
        %586 = vmatpush.bf16.msra.mxu0 %v569
        %587 = vmatpush.bf16.msra.mxu0 %v568
        %588 = vmatpush.bf16.msra.mxu0 %v567
        %589 = vmatpush.bf16.msra.mxu0 %v566
        %590 = vmatmul.bf16.gmra.mxu0 %v513
        %v591 = vpop.f32.mrf.mxu0
        %v592 = vadd.f32 %v532, %v591
        %v593 = vpop.f32.mrf.mxu0
        %v594 = vadd.f32 %v532, %v593
        %595 = vdwg.mxu0
        %v596 = vmax.f32 %v592, 0.0
        %v597 = vmax.f32 %v594, 0.0
        %v598 = vpack.c.bf16 %v597, %v596
        %v599 = vld [vmem:[#allocation5] sm:$0xf]
        %v600 = vld [vmem:[#allocation5 + $0x4] sm:$0xf]
        %v601 = vld [vmem:[#allocation5 + $0x8] sm:$0xf]
        %v602 = vld [vmem:[#allocation5 + $0xc] sm:$0xf]
        %v603 = vld [vmem:[#allocation5 + $0x10] sm:$0xf]
        %v604 = vld [vmem:[#allocation5 + $0x14] sm:$0xf]
        %v605 = vld [vmem:[#allocation5 + $0x18] sm:$0xf]
        %v606 = vld [vmem:[#allocation5 + $0x1c] sm:$0xf]
        %v607 = vld [vmem:[#allocation5 + $0x20] sm:$0xf]
        %v608 = vld [vmem:[#allocation5 + $0x24] sm:$0xf]
        %v609 = vld [vmem:[#allocation5 + $0x28] sm:$0xf]
        %v610 = vld [vmem:[#allocation5 + $0x2c] sm:$0xf]
        %v611 = vld [vmem:[#allocation5 + $0x30] sm:$0xf]
        %v612 = vld [vmem:[#allocation5 + $0x34] sm:$0xf]
        %v613 = vld [vmem:[#allocation5 + $0x38] sm:$0xf]
        %v614 = vld [vmem:[#allocation5 + $0x3c] sm:$0xf]
        %v615 = vld [vmem:[%s8] sm:$0x1]
        %v617 = vperm.slane %v615, 0
        %v635 = vunpack.c.l.b16 %v599
        %v636 = vunpack.c.l.b16 %v600
        %v637 = vunpack.c.l.b16 %v601
        %v638 = vunpack.c.l.b16 %v602
        %v639 = vunpack.c.l.b16 %v603
        %v640 = vunpack.c.l.b16 %v604
        %v641 = vunpack.c.l.b16 %v605
        %v642 = vunpack.c.l.b16 %v606
        %v643 = vunpack.c.l.b16 %v607
        %v644 = vunpack.c.l.b16 %v608
        %v645 = vunpack.c.l.b16 %v609
        %v646 = vunpack.c.l.b16 %v610
        %v647 = vunpack.c.l.b16 %v611
        %v648 = vunpack.c.l.b16 %v612
        %v649 = vunpack.c.l.b16 %v613
        %v650 = vunpack.c.l.b16 %v614
        %v651 = vpack.c.b16 %v636, %v635
        %v652 = vpack.c.b16 %v638, %v637
        %v653 = vpack.c.b16 %v640, %v639
        %v654 = vpack.c.b16 %v642, %v641
        %v655 = vpack.c.b16 %v644, %v643
        %v656 = vpack.c.b16 %v646, %v645
        %v657 = vpack.c.b16 %v648, %v647
        %v658 = vpack.c.b16 %v650, %v649
        %667 = vmatpush.bf16.msra.mxu0 %v658
        %668 = vmatpush.bf16.msra.mxu0 %v657
        %669 = vmatpush.bf16.msra.mxu0 %v656
        %670 = vmatpush.bf16.msra.mxu0 %v655
        %671 = vmatpush.bf16.msra.mxu0 %v654
        %672 = vmatpush.bf16.msra.mxu0 %v653
        %673 = vmatpush.bf16.msra.mxu0 %v652
        %674 = vmatpush.bf16.msra.mxu0 %v651
        %675 = vmatmul.bf16.gmra.mxu0 %v598
        %v676 = vpop.f32.mrf.mxu0
        %v677 = vadd.f32 %v617, %v676
        %v678 = vpop.f32.mrf.mxu0
        %v679 = vadd.f32 %v617, %v678
        %680 = vdwg.mxu0
        %681 = vst [vmem:[%s372] sm:$0xff] %v677
        %682 = vst [vmem:[%s372 + $0x8] sm:$0xff] %v679
        %s683 = sand.u32 %s227, 1
        %s684 = scalar_lea.sflag [#allocation4], %s683
        %s685 = sand.u32 %s227, 1
        %s686 = smul.addr %s685, 16
        %s687 = scalar_lea.vmem [#allocation7], %s686
        // Predicated region
        $region65: #{tpu_custom_call.1} parent=55 // pred_check
          %p688 = pneg %p237
        $region66: #{tpu_custom_call.1} parent=55 // pred_check_branch
          %690 = sbr.rel (%p688) target = $region68
        $region67: #{tpu_custom_call.1} parent=55 // pred_region
          %s691 = smul.u32 2, %s25
          %s692 = ssub.s32 7, %s691
          %p693 = scmp.lt.s32.totalorder %s692, 2
          %s694 = scalar_select %p693, %s692, 2
          %s695 = smul.u32 8, %s694
          %s696 = ssub.s32 16, %s695
          %s697 = sshll.u32 %s696, 4
          %698 = vsyncadd %s684, %s697
          %p699 = scmp.ne.s32.totalorder 0, %s695
          %s700 = smul.addr %s691, 8
          %s701 = scalar_lea.hbm %s9, %s700
          %s702 = smul.u32 8, %s694
          %s703 = sshll.u32 %s687, 4
          %s704 = int_to_ptr.vmem [resolvable:$true] %s703
          %s705 = sshll.u32 %s701, 4
          %s706 = int_to_ptr.hbm [resolvable:$true] %s705
          %s707 = sshll.u32 %s702, 4
          %711 = dma.vmem_to_hbm [thread:$0]  (%p699), %s704, %s707, %s706, %s684, 128, 128, 8
        $region68: #{tpu_custom_call.1} parent=55 // pred_fallthru
          _
      $region56: #{tpu_custom_call.1} parent=5 // pred_fallthru
        _
      %p712 = scmp.le.s32.totalorder 2, %s20
      // Predicated region
      $region69: #{tpu_custom_call.1} parent=5 // pred_check
        %p713 = pneg %p712
      $region70: #{tpu_custom_call.1} parent=5 // pred_check_branch
        %715 = sbr.rel (%p713) target = $region72
      $region71: #{tpu_custom_call.1} parent=5 // pred_region
        %s716 = ssub.s32 %s20, 2
        // Predicated region
        $region73: #{tpu_custom_call.1} parent=71 // pred_check
          %p717 = pneg %p243
        $region74: #{tpu_custom_call.1} parent=71 // pred_check_branch
          %719 = sbr.rel (%p717) target = $region76
        $region75: #{tpu_custom_call.1} parent=71 // pred_region
          %s720 = sand.u32 %s228, 1
          %s721 = scalar_lea.sflag [#allocation4], %s720
          %s722 = sand.u32 %s228, 1
          %s723 = smul.addr %s722, 16
          %s724 = scalar_lea.vmem [#allocation7], %s723
          %726 = dma.done %s721, 256
        $region76: #{tpu_custom_call.1} parent=71 // pred_fallthru
          _
      $region72: #{tpu_custom_call.1} parent=5 // pred_fallthru
        _
    $region6: #{tpu_custom_call.1} parent=1 // loop_footer
      %s24 = sadd.s32 1, %s20
    $region7: #{tpu_custom_call.1} parent=1 // loop_footer_branch
      %19 = sbr.rel target = $region3
    $region8: #{tpu_custom_call.1} parent=1 // loop_exit
      _
    %727 = vsyncpa [#allocation3], 1
    %s728 = scalar_lea.sflag [#allocation3], 1
    %729 = vsyncpa %s728, 1
    %730 = vsyncpa [#allocation6], 1
    %731 = vsyncpa [#allocation4], 1
    %s732 = scalar_lea.sflag [#allocation4], 1
    %733 = vsyncpa %s732, 1

</llo_original>
